<compile_context>
chip_gen: v6e
topology: v6e:2x2x1
jax: 0.10.0
libtpu: 0.0.40
codegen_flags: <defaults>
</compile_context>

<pallas_src>
import jax
import jax.numpy as jnp
from jax.experimental import pallas as pl
from jax.experimental.pallas import tpu as pltpu

LANE = 128
SUBLANE = 8


def _round_up(x, m):
    return ((x + m - 1) // m) * m


def mechanism_kernel(x_ref, wa_ref, ba_ref, wp_ref, bp_ref, out_ref):
    # In-kernel operand cast to the (possibly bf16) weight dtype — no extra HBM pass.
    x = x_ref[...].astype(wa_ref.dtype)
    a = jnp.dot(x, wa_ref[...], preferred_element_type=jnp.float32) + ba_ref[...]
    p = jnp.dot(x, wp_ref[...], preferred_element_type=jnp.float32) + bp_ref[...]
    # a = [alloc | alloc | 0...],  p = [1 | pay | 0...]  ->  a*p = [alloc | alloc*pay | 0...]
    out_ref[...] = (a * p).astype(out_ref.dtype)


def prepare_mechanism_params(wa, ba, wp, bp, *, compute_dtype=None):
    """Fuse + pad the two Linear heads ONCE (hoisted out of the forward pass).

    wa/wp: [Din, Dout] (pre-transposed Linear weights), ba/bp: [Dout].
    compute_dtype=jnp.bfloat16 gives bf16 MXU operands (f32 accumulation).
    """
    Din, Dout = wa.shape
    P = _round_up(2 * Dout, LANE)
    wdt = jnp.dtype(compute_dtype) if compute_dtype is not None else wa.dtype

    wa_slab = jnp.zeros((Din, P), wdt)
    wa_slab = wa_slab.at[:, :Dout].set(wa.astype(wdt))
    wa_slab = wa_slab.at[:, Dout:2 * Dout].set(wa.astype(wdt))

    wp_slab = jnp.zeros((Din, P), wdt)
    wp_slab = wp_slab.at[:, Dout:2 * Dout].set(wp.astype(wdt))

    ba_slab = jnp.zeros((1, P), jnp.float32)
    ba_slab = ba_slab.at[:, :Dout].set(ba.astype(jnp.float32))
    ba_slab = ba_slab.at[:, Dout:2 * Dout].set(ba.astype(jnp.float32))

    bp_slab = jnp.zeros((1, P), jnp.float32)
    bp_slab = bp_slab.at[:, :Dout].set(1.0)
    bp_slab = bp_slab.at[:, Dout:2 * Dout].set(bp.astype(jnp.float32))

    return {"wa": wa_slab, "ba": ba_slab, "wp": wp_slab, "bp": bp_slab, "dout": Dout}


def mechanism_forward(x, params, *, block_b=1024, use_pallas=None):
    """Mechanism.forward: returns (allocation(x), allocation(x) * payment(x))."""
    B, Din = x.shape
    Dout = params["dout"]
    wa, ba, wp, bp = params["wa"], params["ba"], params["wp"], params["bp"]
    P = wa.shape[1]
    out_dtype = x.dtype

    if use_pallas is None:
        # Tiny problems: Pallas per-step + dispatch overhead dominates; XLA GEMM wins.
        use_pallas = B * Din * P >= (1 << 20)

    if not use_pallas:
        a = jnp.dot(x.astype(wa.dtype), wa, preferred_element_type=jnp.float32) + ba
        p = jnp.dot(x.astype(wp.dtype), wp, preferred_element_type=jnp.float32) + bp
        y = (a * p).astype(out_dtype)
        return y[:, :Dout], y[:, Dout:2 * Dout]

    in_item = jnp.dtype(x.dtype).itemsize
    w_item = jnp.dtype(wa.dtype).itemsize
    out_item = jnp.dtype(out_dtype).itemsize

    # --- Batch tile from a VMEM budget (safe on v7x's 64 MiB/TC; ample on v5e/v6e) ---
    budget = 40 * 1024 * 1024
    resident = 2 * Din * P * w_item + 2 * P * 4            # weight slabs + biases (resident)
    per_row = 2 * (Din * in_item + P * out_item)           # x + out tiles, double-buffered
    tb_cap = max((budget - resident) // per_row, SUBLANE)
    if B <= SUBLANE:
        TB = B                                             # block == full batch dim
    else:
        # >=2 grid steps whenever B allows: pipelining + v7x 2-TensorCore sharding.
        TB = min(block_b, tb_cap, _round_up(pl.cdiv(B, 2), SUBLANE))
        TB = max((TB // SUBLANE) * SUBLANE, SUBLANE)
    grid = (pl.cdiv(B, TB),)                               # partial last tile masked by Pallas

    est_vmem = resident + TB * per_row
    vmem_limit = max(32 * 1024 * 1024, min(int(est_vmem * 1.5), 64 * 1024 * 1024))

    cost = pl.CostEstimate(
        flops=2 * B * Din * (2 * P) + B * P,
        transcendentals=0,
        bytes_accessed=(B * Din * in_item + 2 * Din * P * w_item + 2 * P * 4
                        + B * P * out_item),
    )

    y = pl.pallas_call(
        mechanism_kernel,
        out_shape=jax.ShapeDtypeStruct((B, P), out_dtype),
        grid=grid,
        in_specs=[
            pl.BlockSpec((TB, Din), lambda i: (i, 0)),     # x tile (pipelined)
            pl.BlockSpec((Din, P), lambda i: (0, 0)),      # A-slab weights (resident)
            pl.BlockSpec((1, P), lambda i: (0, 0)),        # a-bias (resident)
            pl.BlockSpec((Din, P), lambda i: (0, 0)),      # P-slab weights (resident)
            pl.BlockSpec((1, P), lambda i: (0, 0)),        # p-bias (resident)
        ],
        out_specs=pl.BlockSpec((TB, P), lambda i: (i, 0)),
        compiler_params=pltpu.CompilerParams(
            dimension_semantics=("parallel",),             # shard batch across TCs on v7x
            vmem_limit_bytes=vmem_limit,
        ),
        cost_estimate=cost,
    )(x, wa, ba, wp, bp)

    # The module returns a tuple, so two small slices are unavoidable here; consumers
    # that can work with the packed slab should take y[:, :2*Dout] directly instead.
    return y[:, :Dout], y[:, Dout:2 * Dout]


if __name__ == "__main__":
    key = jax.random.PRNGKey(0)
    kx, kwa, kba, kwp, kbp, kx2 = jax.random.split(key, 6)

    B, Din, Dout = 8, 32, 16  # batch of bid profiles, input feats, n_bidders
    x = jax.random.normal(kx, (B, Din), dtype=jnp.float32)

    # Deterministic "Linear" parameter init (PyTorch-style uniform bound).
    bound = 1.0 / (Din ** 0.5)
    wa = jax.random.uniform(kwa, (Din, Dout), jnp.float32, -bound, bound)
    ba = jax.random.uniform(kba, (Dout,), jnp.float32, -bound, bound)
    wp = jax.random.uniform(kwp, (Din, Dout), jnp.float32, -bound, bound)
    bp = jax.random.uniform(kbp, (Dout,), jnp.float32, -bound, bound)

    # Reference in plain JAX.
    alloc_ref = x @ wa + ba
    pay_ref = alloc_ref * (x @ wp + bp)

    # Fuse/pad parameters ONCE (hoisted out of the forward).
    params = prepare_mechanism_params(wa, ba, wp, bp)

    # f32 Pallas path (forced, to exercise the kernel at demo size).
    fwd = jax.jit(lambda xx: mechanism_forward(xx, params, use_pallas=True))
    alloc, pay = fwd(x)
    jax.block_until_ready((alloc, pay))
    assert alloc.shape == (B, Dout) and pay.shape == (B, Dout)
    assert jnp.allclose(alloc, alloc_ref, atol=1e-5), "allocation mismatch (f32)"
    assert jnp.allclose(pay, pay_ref, atol=1e-5), "payment mismatch (f32)"

    # bf16-operand path (weights bf16 at prep time, x cast inside the kernel).
    params_bf16 = prepare_mechanism_params(wa, ba, wp, bp, compute_dtype=jnp.bfloat16)
    alloc_bf, pay_bf = jax.jit(
        lambda xx: mechanism_forward(xx, params_bf16, use_pallas=True))(x)
    jax.block_until_ready((alloc_bf, pay_bf))
    assert jnp.allclose(alloc_bf, alloc_ref, atol=5e-2, rtol=5e-2), "allocation mismatch (bf16)"
    assert jnp.allclose(pay_bf, pay_ref, atol=5e-2, rtol=5e-2), "payment mismatch (bf16)"

    # Larger, non-divisible batch: exercises the partial last tile (no host-side pad).
    B2 = 300
    x2 = jax.random.normal(kx2, (B2, Din), dtype=jnp.float32)
    alloc2_ref = x2 @ wa + ba
    pay2_ref = alloc2_ref * (x2 @ wp + bp)
    alloc2, pay2 = mechanism_forward(x2, params, use_pallas=True)
    jax.block_until_ready((alloc2, pay2))
    assert jnp.allclose(alloc2, alloc2_ref, atol=1e-5), "allocation mismatch (partial tile)"
    assert jnp.allclose(pay2, pay2_ref, atol=1e-5), "payment mismatch (partial tile)"

    # Tiny-problem auto path falls back to plain fused jnp and must agree too.
    alloc_s, pay_s = mechanism_forward(x, params)
    assert jnp.allclose(alloc_s, alloc_ref, atol=1e-5), "allocation mismatch (fallback)"
    assert jnp.allclose(pay_s, pay_ref, atol=1e-5), "payment mismatch (fallback)"

    print("KERNEL_OK")
</pallas_src>

<mosaic_0001>
module attributes {stable_mosaic.version = 11 : i64} {
  func.func @mechanism_kernel(%arg0: i32, %arg1: memref<8x32xf32, #tpu.memory_space<vmem>>, %arg2: memref<32x128xf32, #tpu.memory_space<vmem>>, %arg3: memref<1x128xf32, #tpu.memory_space<vmem>>, %arg4: memref<32x128xf32, #tpu.memory_space<vmem>>, %arg5: memref<1x128xf32, #tpu.memory_space<vmem>>, %arg6: memref<8x128xf32, #tpu.memory_space<vmem>>) attributes {dimension_semantics = [#tpu.dimension_semantics<parallel>], iteration_bounds = array<i64: 1>, scalar_prefetch = 0 : i64, scratch_operands = 0 : i64, tpu.core_type = #tpu.core_type<tc>, window_params = [{transform_indices = @transform_0, window_bounds = array<i64: 8, 32>}, {pipeline_mode = #tpu.pipeline_mode<synchronous>, transform_indices = @transform_1, window_bounds = array<i64: 32, 128>}, {pipeline_mode = #tpu.pipeline_mode<synchronous>, transform_indices = @transform_2, window_bounds = array<i64: 1, 128>}, {pipeline_mode = #tpu.pipeline_mode<synchronous>, transform_indices = @transform_3, window_bounds = array<i64: 32, 128>}, {pipeline_mode = #tpu.pipeline_mode<synchronous>, transform_indices = @transform_4, window_bounds = array<i64: 1, 128>}, {transform_indices = @transform_5, window_bounds = array<i64: 8, 128>}]} {
    %c0 = arith.constant 0 : index
    %c0_0 = arith.constant 0 : index
    %0 = vector.load %arg1[%c0, %c0_0] : memref<8x32xf32, #tpu.memory_space<vmem>>, vector<8x32xf32>
    %c0_1 = arith.constant 0 : index
    %c0_2 = arith.constant 0 : index
    %1 = vector.load %arg2[%c0_1, %c0_2] : memref<32x128xf32, #tpu.memory_space<vmem>>, vector<32x128xf32>
    %cst = arith.constant dense<0.000000e+00> : vector<8x128xf32>
    %2 = tpu.matmul %0, %1, %cst {dimension_numbers = #tpu.dot_dimension_numbers<[1], [0], [0], [1], [0, 0, 1, 1], [], []>} : vector<8x32xf32>, vector<32x128xf32>, vector<8x128xf32> -> vector<8x128xf32>
    %c0_3 = arith.constant 0 : index
    %c0_4 = arith.constant 0 : index
    %3 = vector.load %arg3[%c0_3, %c0_4] : memref<1x128xf32, #tpu.memory_space<vmem>>, vector<1x128xf32>
    %4 = vector.broadcast %3 : vector<1x128xf32> to vector<8x128xf32>
    %5 = arith.addf %2, %4 : vector<8x128xf32>
    %c0_5 = arith.constant 0 : index
    %c0_6 = arith.constant 0 : index
    %6 = vector.load %arg4[%c0_5, %c0_6] : memref<32x128xf32, #tpu.memory_space<vmem>>, vector<32x128xf32>
    %cst_7 = arith.constant dense<0.000000e+00> : vector<8x128xf32>
    %7 = tpu.matmul %0, %6, %cst_7 {dimension_numbers = #tpu.dot_dimension_numbers<[1], [0], [0], [1], [0, 0, 1, 1], [], []>} : vector<8x32xf32>, vector<32x128xf32>, vector<8x128xf32> -> vector<8x128xf32>
    %c0_8 = arith.constant 0 : index
    %c0_9 = arith.constant 0 : index
    %8 = vector.load %arg5[%c0_8, %c0_9] : memref<1x128xf32, #tpu.memory_space<vmem>>, vector<1x128xf32>
    %9 = vector.broadcast %8 : vector<1x128xf32> to vector<8x128xf32>
    %10 = arith.addf %7, %9 : vector<8x128xf32>
    %11 = arith.mulf %5, %10 : vector<8x128xf32>
    %c0_10 = arith.constant 0 : index
    %c0_11 = arith.constant 0 : index
    %12 = vector.load %arg6[%c0_10, %c0_11] : memref<8x128xf32, #tpu.memory_space<vmem>>, vector<8x128xf32>
    tpu.vector_store %arg6[%c0_10, %c0_11], %11 {strides = array<i32>} : memref<8x128xf32, #tpu.memory_space<vmem>>, vector<8x128xf32>,
    return
  }
  func.func @transform_0(%arg0: i32) -> (i32, i32) {
    %c0_i32 = arith.constant 0 : i32
    %c0_i32_0 = arith.constant 0 : i32
    return %arg0, %c0_i32 : i32, i32
  }
  func.func @transform_1(%arg0: i32) -> (i32, i32) {
    %c0_i32 = arith.constant 0 : i32
    %c0_i32_0 = arith.constant 0 : i32
    %c0_i32_1 = arith.constant 0 : i32
    return %c0_i32, %c0_i32_0 : i32, i32
  }
  func.func @transform_2(%arg0: i32) -> (i32, i32) {
    %c0_i32 = arith.constant 0 : i32
    %c0_i32_0 = arith.constant 0 : i32
    %c0_i32_1 = arith.constant 0 : i32
    return %c0_i32, %c0_i32_0 : i32, i32
  }
  func.func @transform_3(%arg0: i32) -> (i32, i32) {
    %c0_i32 = arith.constant 0 : i32
    %c0_i32_0 = arith.constant 0 : i32
    %c0_i32_1 = arith.constant 0 : i32
    return %c0_i32, %c0_i32_0 : i32, i32
  }
  func.func @transform_4(%arg0: i32) -> (i32, i32) {
    %c0_i32 = arith.constant 0 : i32
    %c0_i32_0 = arith.constant 0 : i32
    %c0_i32_1 = arith.constant 0 : i32
    return %c0_i32, %c0_i32_0 : i32, i32
  }
  func.func @transform_5(%arg0: i32) -> (i32, i32) {
    %c0_i32 = arith.constant 0 : i32
    %c0_i32_0 = arith.constant 0 : i32
    return %arg0, %c0_i32 : i32, i32
  }
}

</mosaic_0001>

<llo_original>
// kernel: _lambda_.1
$region0: #{_lambda_.1}
  #allocation0 [shape = 'u32[]', space=smem, size = 0x4, offset = 0x4, fixed_abs, tag = 'smem constant byte address 0x4 - core index']
  #allocation1 [shape = 'u32[144,128]{1,0:T(1,128)}', space=vmem, size = 0x12000, scoped, tag = 'internal scratch']
  %s0 = inlined_call_operand.hbm [shape: f32[8,32], index: 0, kind: input, shape index: {}]
  %s1 = inlined_call_operand.hbm [shape: f32[32,128], index: 1, kind: input, shape index: {}]
  %s2 = inlined_call_operand.vmem [shape: f32[1,128], index: 2, kind: input, shape index: {}]
  %s3 = inlined_call_operand.hbm [shape: f32[32,128], index: 3, kind: input, shape index: {}]
  %s4 = inlined_call_operand.vmem [shape: f32[1,128], index: 4, kind: input, shape index: {}]
  %s5 = inlined_call_operand.vmem [shape: f32[8,128], index: 5, kind: output, shape index: {}]
  %s6 = sld [smem:[#allocation0]]
  $region42: #{_lambda_.1} parent=0
    _
  %s8 = ssub.s32 1, %s6
  %s9 = scalar_select 0, %s8, %s6
  $region1: #{_lambda_.1} parent=0
    #allocation2 [shape = 'u8[4096]{0}', space=vmem, size = 0x1000, scoped, tag = 'input window, operand 0, single buffered']
    #allocation3 [shape = 's32[1]{0}', space=sflag, size = 0x4, scoped, tag = 'scoped memory for _lambda_.1']
    #allocation4 [shape = 'u8[16384]{0}', space=vmem, size = 0x4000, scoped, tag = 'input window, operand 1, single buffered']
    #allocation5 [shape = 's32[1]{0}', space=sflag, size = 0x4, scoped, tag = 'scoped memory for _lambda_.1']
    #allocation6 [shape = 'u8[16384]{0}', space=vmem, size = 0x4000, scoped, tag = 'input window, operand 3, single buffered']
    %10 = vsyncpa [#allocation3], 0
    %11 = vsyncpa [#allocation5], 0
    // Predicated region
    $region2: #{_lambda_.1} parent=1 // pred_check
      _
    $region3: #{_lambda_.1} parent=1 // pred_check_branch
      %13 = sbr.rel (0) target = $region5
    $region4: #{_lambda_.1} parent=1 // pred_region
      %s15 = ssub.s32 128, 128
      %16 = vsyncadd [#allocation3], %s15
      %s18 = sshll.u32 [#allocation2], 4
      %s19 = int_to_ptr.vmem [resolvable:$true] %s18
      %21 = dma.hbm_to_vmem [thread:$0]  %s0, 128, %s19, [#allocation3]
    $region5: #{_lambda_.1} parent=1 // pred_fallthru
      _
    // Predicated region
    $region6: #{_lambda_.1} parent=1 // pred_check
      _
    $region7: #{_lambda_.1} parent=1 // pred_check_branch
      %23 = sbr.rel (0) target = $region9
    $region8: #{_lambda_.1} parent=1 // pred_region
      %s25 = ssub.s32 512, 512
      %26 = vsyncadd [#allocation5], %s25
      %s27 = sshll.u32 [#allocation4], 4
      %s28 = int_to_ptr.vmem [resolvable:$true] %s27
      %33 = dma.hbm_to_vmem [thread:$0]  %s1, 512, %s28, [#allocation5], 128, 128, 8
    $region9: #{_lambda_.1} parent=1 // pred_fallthru
      _
    // Predicated region
    $region10: #{_lambda_.1} parent=1 // pred_check
      _
    $region11: #{_lambda_.1} parent=1 // pred_check_branch
      %35 = sbr.rel (0) target = $region13
    $region12: #{_lambda_.1} parent=1 // pred_region
      _
    $region13: #{_lambda_.1} parent=1 // pred_fallthru
      _
    // Predicated region
    $region14: #{_lambda_.1} parent=1 // pred_check
      _
    $region15: #{_lambda_.1} parent=1 // pred_check_branch
      %37 = sbr.rel (0) target = $region17
    $region16: #{_lambda_.1} parent=1 // pred_region
      %s39 = ssub.s32 512, 512
      %40 = vsyncadd [#allocation5], %s39
      %s41 = sshll.u32 [#allocation6], 4
      %s42 = int_to_ptr.vmem [resolvable:$true] %s41
      %47 = dma.hbm_to_vmem [thread:$0]  %s3, 512, %s42, [#allocation5], 128, 128, 8
    $region17: #{_lambda_.1} parent=1 // pred_fallthru
      _
    // Predicated region
    $region18: #{_lambda_.1} parent=1 // pred_check
      _
    $region19: #{_lambda_.1} parent=1 // pred_check_branch
      %49 = sbr.rel (0) target = $region21
    $region20: #{_lambda_.1} parent=1 // pred_region
      _
    $region21: #{_lambda_.1} parent=1 // pred_fallthru
      _
    // Predicated region
    $region22: #{_lambda_.1} parent=1 // pred_check
      _
    $region23: #{_lambda_.1} parent=1 // pred_check_branch
      %51 = sbr.rel (0) target = $region25
    $region24: #{_lambda_.1} parent=1 // pred_region
      %52 = dma.done [#allocation3], 128
    $region25: #{_lambda_.1} parent=1 // pred_fallthru
      _
    // Predicated region
    $region26: #{_lambda_.1} parent=1 // pred_check
      _
    $region27: #{_lambda_.1} parent=1 // pred_check_branch
      %54 = sbr.rel (0) target = $region29
    $region28: #{_lambda_.1} parent=1 // pred_region
      %55 = dma.done [#allocation5], 512
    $region29: #{_lambda_.1} parent=1 // pred_fallthru
      _
    // Predicated region
    $region30: #{_lambda_.1} parent=1 // pred_check
      _
    $region31: #{_lambda_.1} parent=1 // pred_check_branch
      %57 = sbr.rel (0) target = $region33
    $region32: #{_lambda_.1} parent=1 // pred_region
      %58 = dma.done [#allocation5], 512
    $region33: #{_lambda_.1} parent=1 // pred_fallthru
      _
    %v59 = vld [vmem:[#allocation2] sm:$0xff]
    %v60 = vld [vmem:[#allocation4] sm:$0xff]
    %v61 = vld [vmem:[#allocation4 + $0x8] sm:$0xff]
    %v62 = vld [vmem:[#allocation4 + $0x10] sm:$0xff]
    %v63 = vld [vmem:[#allocation4 + $0x18] sm:$0xff]
    %v64 = vld [vmem:[%s2] sm:$0x1]
    %v66 = vlaneseq
    %v67 = vshrl.u32 %v66, 7
    %v68 = vsub.s32 0, %v67
    %v69 = vrot.slane %v64, %v68
    %vm71 = vcmask 261120
    %v73 = vsel %vm71, %v59, 0
    %75 = vmatprep.subr.mxu0 0.0
    %76 = vmatpush1.msra.mxu0 0.0
    %77 = vmatprep.subr.mxu0 0.0
    %78 = vmatpush1.msra.mxu0 0.0
    %79 = vmatprep.subr.mxu0 0.0
    %80 = vmatpush1.msra.mxu0 0.0
    %81 = vmatprep.subr.mxu0 0.0
    %82 = vmatpush1.msra.mxu0 0.0
    %83 = vmatprep.subr.mxu0 0.0
    %84 = vmatpush1.msra.mxu0 0.0
    %85 = vmatprep.subr.mxu0 0.0
    %86 = vmatpush1.msra.mxu0 0.0
    %87 = vmatprep.subr.mxu0 0.0
    %88 = vmatpush1.msra.mxu0 0.0
    %89 = vmatprep.subr.mxu0 0.0
    %90 = vmatpush1.msra.mxu0 0.0
    %91 = vmatprep.subr.mxu0 0.0
    %92 = vmatpush1.msra.mxu0 0.0
    %93 = vmatprep.subr.mxu0 0.0
    %94 = vmatpush1.msra.mxu0 0.0
    %95 = vmatprep.subr.mxu0 0.0
    %96 = vmatpush1.msra.mxu0 0.0
    %97 = vmatprep.subr.mxu0 0.0
    %98 = vmatpush1.msra.mxu0 0.0
    %99 = vmatprep.subr.mxu0 0.0
    %100 = vmatpush1.msra.mxu0 %v63
    %101 = vmatprep.subr.mxu0 0.0
    %102 = vmatpush1.msra.mxu0 %v62
    %103 = vmatprep.subr.mxu0 0.0
    %104 = vmatpush1.msra.mxu0 %v61
    %105 = vmatprep.subr.mxu0 0.0
    %106 = vmatpush1.msra.mxu0 %v60
    %107 = vmatprep.subr.mxu0 0.0
    %108 = vmatpush2.msra.mxu0 0.0
    %109 = vmatprep.subr.mxu0 0.0
    %110 = vmatpush2.msra.mxu0 0.0
    %111 = vmatprep.subr.mxu0 0.0
    %112 = vmatpush2.msra.mxu0 0.0
    %113 = vmatprep.subr.mxu0 0.0
    %114 = vmatpush2.msra.mxu0 0.0
    %115 = vmatprep.subr.mxu0 0.0
    %116 = vmatpush2.msra.mxu0 0.0
    %117 = vmatprep.subr.mxu0 0.0
    %118 = vmatpush2.msra.mxu0 0.0
    %119 = vmatprep.subr.mxu0 0.0
    %120 = vmatpush2.msra.mxu0 0.0
    %121 = vmatprep.subr.mxu0 0.0
    %122 = vmatpush2.msra.mxu0 0.0
    %123 = vmatprep.subr.mxu0 0.0
    %124 = vmatpush2.msra.mxu0 0.0
    %125 = vmatprep.subr.mxu0 0.0
    %126 = vmatpush2.msra.mxu0 0.0
    %127 = vmatprep.subr.mxu0 0.0
    %128 = vmatpush2.msra.mxu0 0.0
    %129 = vmatprep.subr.mxu0 0.0
    %130 = vmatpush2.msra.mxu0 0.0
    %131 = vmatprep.subr.mxu0 0.0
    %132 = vmatpush2.msra.mxu0 0.0
    %133 = vmatprep.subr.mxu0 0.0
    %134 = vmatpush2.msra.mxu0 0.0
    %135 = vmatprep.subr.mxu0 0.0
    %136 = vmatpush2.msra.mxu0 0.0
    %137 = vmatprep.subr.mxu0 0.0
    %138 = vmatpush2.msra.mxu0 0.0
    %139 = vmatprep.mubr.f32.mxu0 0.0
    %140 = vmatmul.mubr.f32.gmra.mxu0 %v73
    %v141 = vpop.f32.mrf.mxu0
    %v142 = vadd.f32 %v69, %v141
    %v143 = vpop.f32.mrf.mxu0
    %144 = vdwg.mxu0
    %v145 = vld [vmem:[#allocation6] sm:$0xff]
    %v146 = vld [vmem:[#allocation6 + $0x8] sm:$0xff]
    %v147 = vld [vmem:[#allocation6 + $0x10] sm:$0xff]
    %v148 = vld [vmem:[#allocation6 + $0x18] sm:$0xff]
    %v149 = vld [vmem:[%s4] sm:$0x1]
    %v151 = vlaneseq
    %v152 = vshrl.u32 %v151, 7
    %v153 = vsub.s32 0, %v152
    %v154 = vrot.slane %v149, %v153
    %156 = vmatprep.subr.mxu0 0.0
    %157 = vmatpush1.msra.mxu0 0.0
    %158 = vmatprep.subr.mxu0 0.0
    %159 = vmatpush1.msra.mxu0 0.0
    %160 = vmatprep.subr.mxu0 0.0
    %161 = vmatpush1.msra.mxu0 0.0
    %162 = vmatprep.subr.mxu0 0.0
    %163 = vmatpush1.msra.mxu0 0.0
    %164 = vmatprep.subr.mxu0 0.0
    %165 = vmatpush1.msra.mxu0 0.0
    %166 = vmatprep.subr.mxu0 0.0
    %167 = vmatpush1.msra.mxu0 0.0
    %168 = vmatprep.subr.mxu0 0.0
    %169 = vmatpush1.msra.mxu0 0.0
    %170 = vmatprep.subr.mxu0 0.0
    %171 = vmatpush1.msra.mxu0 0.0
    %172 = vmatprep.subr.mxu0 0.0
    %173 = vmatpush1.msra.mxu0 0.0
    %174 = vmatprep.subr.mxu0 0.0
    %175 = vmatpush1.msra.mxu0 0.0
    %176 = vmatprep.subr.mxu0 0.0
    %177 = vmatpush1.msra.mxu0 0.0
    %178 = vmatprep.subr.mxu0 0.0
    %179 = vmatpush1.msra.mxu0 0.0
    %180 = vmatprep.subr.mxu0 0.0
    %181 = vmatpush1.msra.mxu0 %v148
    %182 = vmatprep.subr.mxu0 0.0
    %183 = vmatpush1.msra.mxu0 %v147
    %184 = vmatprep.subr.mxu0 0.0
    %185 = vmatpush1.msra.mxu0 %v146
    %186 = vmatprep.subr.mxu0 0.0
    %187 = vmatpush1.msra.mxu0 %v145
    %188 = vmatprep.subr.mxu0 0.0
    %189 = vmatpush2.msra.mxu0 0.0
    %190 = vmatprep.subr.mxu0 0.0
    %191 = vmatpush2.msra.mxu0 0.0
    %192 = vmatprep.subr.mxu0 0.0
    %193 = vmatpush2.msra.mxu0 0.0
    %194 = vmatprep.subr.mxu0 0.0
    %195 = vmatpush2.msra.mxu0 0.0
    %196 = vmatprep.subr.mxu0 0.0
    %197 = vmatpush2.msra.mxu0 0.0
    %198 = vmatprep.subr.mxu0 0.0
    %199 = vmatpush2.msra.mxu0 0.0
    %200 = vmatprep.subr.mxu0 0.0
    %201 = vmatpush2.msra.mxu0 0.0
    %202 = vmatprep.subr.mxu0 0.0
    %203 = vmatpush2.msra.mxu0 0.0
    %204 = vmatprep.subr.mxu0 0.0
    %205 = vmatpush2.msra.mxu0 0.0
    %206 = vmatprep.subr.mxu0 0.0
    %207 = vmatpush2.msra.mxu0 0.0
    %208 = vmatprep.subr.mxu0 0.0
    %209 = vmatpush2.msra.mxu0 0.0
    %210 = vmatprep.subr.mxu0 0.0
    %211 = vmatpush2.msra.mxu0 0.0
    %212 = vmatprep.subr.mxu0 0.0
    %213 = vmatpush2.msra.mxu0 0.0
    %214 = vmatprep.subr.mxu0 0.0
    %215 = vmatpush2.msra.mxu0 0.0
    %216 = vmatprep.subr.mxu0 0.0
    %217 = vmatpush2.msra.mxu0 0.0
    %218 = vmatprep.subr.mxu0 0.0
    %219 = vmatpush2.msra.mxu0 0.0
    %220 = vmatprep.mubr.f32.mxu0 0.0
    %221 = vmatmul.mubr.f32.gmra.mxu0 %v73
    %v222 = vpop.f32.mrf.mxu0
    %v223 = vadd.f32 %v154, %v222
    %v224 = vpop.f32.mrf.mxu0
    %225 = vdwg.mxu0
    %v226 = vmul.f32 %v142, %v223
    %227 = vst [vmem:[%s5] sm:$0xff] %v226
    // Predicated region
    $region34: #{_lambda_.1} parent=1 // pred_check
      _
    $region35: #{_lambda_.1} parent=1 // pred_check_branch
      %229 = sbr.rel (0) target = $region37
    $region36: #{_lambda_.1} parent=1 // pred_region
      _
    $region37: #{_lambda_.1} parent=1 // pred_fallthru
      _
    // Predicated region
    $region38: #{_lambda_.1} parent=1 // pred_check
      _
    $region39: #{_lambda_.1} parent=1 // pred_check_branch
      %231 = sbr.rel (0) target = $region41
    $region40: #{_lambda_.1} parent=1 // pred_region
      _
    $region41: #{_lambda_.1} parent=1 // pred_fallthru
      _
    %232 = vsyncpa [#allocation3], 1
    %233 = vsyncpa [#allocation5], 1

</llo_original>
